<compile_context>
chip_gen: v6e
topology: v6e:2x2x1
jax: 0.10.0
libtpu: 0.0.40
codegen_flags: <defaults>
</compile_context>

<pallas_src>
import functools

import jax
import jax.numpy as jnp
from jax import lax
from jax.experimental import pallas as pl
from jax.experimental.pallas import tpu as pltpu


def _bsconv_kernel(x_ref, wpw_ref, wdw_ref, b_ref, o_ref, *, rb, Wp):
    """One (image, row-block) step.

    x_ref   : (1, 1, Cin, (rb+2)*Wp)  windowed input rows (halo + zero pad baked in)
    wpw_ref : (Cout, Cin)             pointwise weight
    wdw_ref : (Cout, 9)               depthwise weight, tap index k = 3*ky + kx
    b_ref   : (Cout, 1)               depthwise bias
    o_ref   : (1, Cout, rb*Wp)        output rows (padded-width layout)
    """
    f32 = jnp.float32
    Lw = (rb + 2) * Wp
    L = rb * Wp

    x = x_ref[0, 0]                                            # (Cin, Lw), native dtype
    # Pointwise 1x1 conv on the MXU (native-dtype operands, f32 accumulate).
    t = jnp.dot(wpw_ref[...], x, preferred_element_type=f32)   # (Cout, Lw)

    wdw = wdw_ref[...].astype(f32)                             # (Cout, 9)

    # Depthwise 3x3: output position q (block row o, padded col c) sits at window
    # position q + Wp, so tap (ky, kx) reads t[q + ky*Wp + kx - 1]; zero padding in
    # the window makes every out-of-image tap exactly zero (pw has no bias).
    acc = None
    for ky in range(3):
        for kx in range(3):
            k = 3 * ky + kx
            shift = (-(ky * Wp + kx - 1)) % Lw
            src = t if shift == 0 else pltpu.roll(t, shift, axis=1)
            term = src[:, :L] * wdw[:, k:k + 1]                # (Cout,1) lane-broadcast
            acc = term if acc is None else acc + term
    acc = acc + b_ref[...].astype(f32)                         # single bias add at the end
    o_ref[0] = acc.astype(o_ref.dtype)


def _vmem_capacity_bytes():
    try:
        cap = getattr(pltpu.get_tpu_info(), "vmem_capacity_bytes", None)
        if cap:
            return int(cap)
    except Exception:
        pass
    return 64 << 20   # conservative (v7x-sized) default


def _choose_tiling(N, H, W, Cin, Cout, in_isz, out_isz, budget_bytes):
    """Pick (rb, Wp): rb = output rows per grid step (even), Wp = padded width
    (multiple of 64, so rolled / stored lane extents are multiples of 128)."""
    Wp = max(((W + 2 + 63) // 64) * 64, 64)

    def step_bytes(rb):
        lw, lo = (rb + 2) * Wp, rb * Wp
        return (2 * Cin * lw * in_isz          # double-buffered input window
                + 2 * Cout * lo * out_isz      # double-buffered output block
                + 4 * Cout * lw * 4            # f32 temporaries: t, rolled, acc, slack
                + (1 << 16))

    if H <= 8:
        return ((H + 1) // 2) * 2, Wp          # whole (even-rounded) image, one block

    # Largest multiple-of-8 row block that fits the VMEM budget.
    rb = 8
    for cand in range(((H + 7) // 8) * 8, 7, -8):
        if step_bytes(cand) <= budget_bytes:
            rb = cand
            break

    # Guarantee >= 2 grid steps so v7x's second TensorCore has work at batch 1.
    if N * ((H + rb - 1) // rb) < 2:
        rb = max(8, (((H + 1) // 2) // 8) * 8)

    return rb, Wp


@jax.jit
def bsconvu_forward(x_nchw, w_pw, w_dw, bias):
    """BSConvU forward (matches the PyTorch module; NCHW in / NCHW out).

    x_nchw : (N, Cin, H, W)
    w_pw   : (Cout, Cin, 1, 1)  pointwise weight (no bias)
    w_dw   : (Cout, 1, 3, 3)    depthwise weight
    bias   : (Cout,)            depthwise bias
    """
    N, Cin, H, W = x_nchw.shape
    Cout = w_pw.shape[0]

    in_isz = jnp.dtype(x_nchw.dtype).itemsize
    cap = _vmem_capacity_bytes()
    rb, Wp = _choose_tiling(N, H, W, Cin, Cout, in_isz, in_isz, int(cap * 0.45))
    n_rb = (H + rb - 1) // rb
    H_r = n_rb * rb
    Lw = (rb + 2) * Wp
    L = rb * Wp

    # Conv zero padding + row/width round-up, then overlapping row windows
    # (rb + 2 rows each) so every grid step is self-contained (no halo masks).
    x_pad = jnp.pad(x_nchw, ((0, 0), (0, 0), (1, H_r - H + 1), (1, Wp - W - 1)))
    x_win = jnp.stack(
        [lax.slice_in_dim(x_pad, i * rb, i * rb + rb + 2, axis=2) for i in range(n_rb)],
        axis=1)                                              # (N, n_rb, Cin, rb+2, Wp)
    x_win = x_win.reshape(N, n_rb, Cin, Lw)                  # contiguous reshape

    wpw = w_pw.reshape(Cout, Cin).astype(x_nchw.dtype)       # native-dtype MXU operand
    wdw = w_dw.reshape(Cout, 9)
    b2d = bias.reshape(Cout, 1)

    out_flat = pl.pallas_call(
        functools.partial(_bsconv_kernel, rb=rb, Wp=Wp),
        out_shape=jax.ShapeDtypeStruct((N, Cout, H_r * Wp), x_nchw.dtype),
        grid_spec=pltpu.PrefetchScalarGridSpec(
            num_scalar_prefetch=0,
            grid=(N, n_rb),
            in_specs=[
                pl.BlockSpec((1, 1, Cin, Lw), lambda b, i: (b, i, 0, 0)),
                pl.BlockSpec((Cout, Cin), lambda b, i: (0, 0)),
                pl.BlockSpec((Cout, 9), lambda b, i: (0, 0)),
                pl.BlockSpec((Cout, 1), lambda b, i: (0, 0)),
            ],
            out_specs=pl.BlockSpec((1, Cout, L), lambda b, i: (b, 0, i)),
        ),
        compiler_params=pltpu.CompilerParams(
            dimension_semantics=("parallel", "parallel"),
            vmem_limit_bytes=int(cap * 0.75)),
    )(x_win, wpw, wdw, b2d)

    # Crop the padded-width layout back to (N, Cout, H, W).
    return out_flat.reshape(N, Cout, H_r, Wp)[:, :, :H, 1:W + 1]


def _reference_forward(x_nchw, w_pw, w_dw, bias):
    """Pure-XLA reference (matches torch.nn.Conv2d semantics)."""
    Cout = w_pw.shape[0]
    y = lax.conv_general_dilated(
        x_nchw, w_pw, window_strides=(1, 1), padding="VALID",
        dimension_numbers=("NCHW", "OIHW", "NCHW"))
    y = lax.conv_general_dilated(
        y, w_dw, window_strides=(1, 1), padding=((1, 1), (1, 1)),
        dimension_numbers=("NCHW", "OIHW", "NCHW"),
        feature_group_count=Cout)
    return y + bias.reshape(1, Cout, 1, 1)


if __name__ == "__main__":
    key = jax.random.PRNGKey(0)

    cases = [
        dict(N=2, Cin=4, Cout=8, H=16, W=16),   # required small case
        dict(N=1, Cin=4, Cout=8, H=32, W=16),   # batch 1 -> multiple row blocks
        dict(N=1, Cin=3, Cout=5, H=7, W=13),    # odd / unaligned shapes
    ]
    for idx, c in enumerate(cases):
        k_x, k_pw, k_dw, k_b, key = jax.random.split(key, 5)
        x = jax.random.normal(k_x, (c["N"], c["Cin"], c["H"], c["W"]), dtype=jnp.float32)
        w_pw = jax.random.normal(k_pw, (c["Cout"], c["Cin"], 1, 1), dtype=jnp.float32) * 0.1
        w_dw = jax.random.normal(k_dw, (c["Cout"], 1, 3, 3), dtype=jnp.float32) * 0.1
        bias = jax.random.normal(k_b, (c["Cout"],), dtype=jnp.float32) * 0.1

        out = bsconvu_forward(x, w_pw, w_dw, bias)
        jax.block_until_ready(out)

        ref = _reference_forward(x, w_pw, w_dw, bias)
        assert out.shape == ref.shape, f"shape mismatch (case {idx})"
        assert jnp.allclose(out, ref, atol=2e-4, rtol=2e-4), f"mismatch vs reference (case {idx})"

    print("KERNEL_OK")
</pallas_src>

<mosaic_0001>
module attributes {stable_mosaic.version = 11 : i64} {
  func.func @_bsconv_kernel(%arg0: i32, %arg1: i32, %arg2: memref<1x1x4x1152xf32, #tpu.memory_space<vmem>>, %arg3: memref<8x4xf32, #tpu.memory_space<vmem>>, %arg4: memref<8x9xf32, #tpu.memory_space<vmem>>, %arg5: memref<8x1xf32, #tpu.memory_space<vmem>>, %arg6: memref<1x8x1024xf32, #tpu.memory_space<vmem>>) attributes {dimension_semantics = [#tpu.dimension_semantics<parallel>, #tpu.dimension_semantics<parallel>], iteration_bounds = array<i64: 2, 1>, scalar_prefetch = 0 : i64, scratch_operands = 0 : i64, tpu.core_type = #tpu.core_type<tc>, window_params = [{transform_indices = @transform_0, window_bounds = array<i64: 1, 1, 4, 1152>}, {pipeline_mode = #tpu.pipeline_mode<synchronous>, transform_indices = @transform_1, window_bounds = array<i64: 8, 4>}, {pipeline_mode = #tpu.pipeline_mode<synchronous>, transform_indices = @transform_2, window_bounds = array<i64: 8, 9>}, {pipeline_mode = #tpu.pipeline_mode<synchronous>, transform_indices = @transform_3, window_bounds = array<i64: 8, 1>}, {transform_indices = @transform_4, window_bounds = array<i64: 1, 8, 1024>}]} {
    %c0 = arith.constant 0 : index
    %c0_0 = arith.constant 0 : index
    %c0_1 = arith.constant 0 : index
    %c0_2 = arith.constant 0 : index
    %0 = vector.load %arg2[%c0, %c0_0, %c0_1, %c0_2] : memref<1x1x4x1152xf32, #tpu.memory_space<vmem>>, vector<1x1x4x1152xf32>
    %1 = vector.shape_cast %0 : vector<1x1x4x1152xf32> to vector<4x1152xf32>
    %c0_3 = arith.constant 0 : index
    %c0_4 = arith.constant 0 : index
    %2 = vector.load %arg3[%c0_3, %c0_4] : memref<8x4xf32, #tpu.memory_space<vmem>>, vector<8x4xf32>
    %cst = arith.constant dense<0.000000e+00> : vector<8x1152xf32>
    %3 = tpu.matmul %2, %1, %cst {dimension_numbers = #tpu.dot_dimension_numbers<[1], [0], [0], [1], [0, 0, 1, 1], [], []>} : vector<8x4xf32>, vector<4x1152xf32>, vector<8x1152xf32> -> vector<8x1152xf32>
    %c0_5 = arith.constant 0 : index
    %c0_6 = arith.constant 0 : index
    %4 = vector.load %arg4[%c0_5, %c0_6] : memref<8x9xf32, #tpu.memory_space<vmem>>, vector<8x9xf32>
    %c1_i32 = arith.constant 1 : i32
    %5 = tpu.dynamic_rotate %3 by %c1_i32 dim 1 : vector<8x1152xf32>, i32 -> vector<8x1152xf32>
    %6 = vector.extract_strided_slice %5 {offsets = [0, 0], sizes = [8, 1024], strides = [1, 1]} : vector<8x1152xf32> to vector<8x1024xf32>
    %7 = vector.extract_strided_slice %4 {offsets = [0, 0], sizes = [8, 1], strides = [1, 1]} : vector<8x9xf32> to vector<8x1xf32>
    %8 = vector.broadcast %7 : vector<8x1xf32> to vector<8x1024xf32>
    %9 = arith.mulf %6, %8 : vector<8x1024xf32>
    %10 = vector.extract_strided_slice %3 {offsets = [0, 0], sizes = [8, 1024], strides = [1, 1]} : vector<8x1152xf32> to vector<8x1024xf32>
    %11 = vector.extract_strided_slice %4 {offsets = [0, 1], sizes = [8, 1], strides = [1, 1]} : vector<8x9xf32> to vector<8x1xf32>
    %12 = vector.broadcast %11 : vector<8x1xf32> to vector<8x1024xf32>
    %13 = arith.mulf %10, %12 : vector<8x1024xf32>
    %14 = arith.addf %9, %13 : vector<8x1024xf32>
    %c1151_i32 = arith.constant 1151 : i32
    %15 = tpu.dynamic_rotate %3 by %c1151_i32 dim 1 : vector<8x1152xf32>, i32 -> vector<8x1152xf32>
    %16 = vector.extract_strided_slice %15 {offsets = [0, 0], sizes = [8, 1024], strides = [1, 1]} : vector<8x1152xf32> to vector<8x1024xf32>
    %17 = vector.extract_strided_slice %4 {offsets = [0, 2], sizes = [8, 1], strides = [1, 1]} : vector<8x9xf32> to vector<8x1xf32>
    %18 = vector.broadcast %17 : vector<8x1xf32> to vector<8x1024xf32>
    %19 = arith.mulf %16, %18 : vector<8x1024xf32>
    %20 = arith.addf %14, %19 : vector<8x1024xf32>
    %c1089_i32 = arith.constant 1089 : i32
    %21 = tpu.dynamic_rotate %3 by %c1089_i32 dim 1 : vector<8x1152xf32>, i32 -> vector<8x1152xf32>
    %22 = vector.extract_strided_slice %21 {offsets = [0, 0], sizes = [8, 1024], strides = [1, 1]} : vector<8x1152xf32> to vector<8x1024xf32>
    %23 = vector.extract_strided_slice %4 {offsets = [0, 3], sizes = [8, 1], strides = [1, 1]} : vector<8x9xf32> to vector<8x1xf32>
    %24 = vector.broadcast %23 : vector<8x1xf32> to vector<8x1024xf32>
    %25 = arith.mulf %22, %24 : vector<8x1024xf32>
    %26 = arith.addf %20, %25 : vector<8x1024xf32>
    %c1088_i32 = arith.constant 1088 : i32
    %27 = tpu.dynamic_rotate %3 by %c1088_i32 dim 1 : vector<8x1152xf32>, i32 -> vector<8x1152xf32>
    %28 = vector.extract_strided_slice %27 {offsets = [0, 0], sizes = [8, 1024], strides = [1, 1]} : vector<8x1152xf32> to vector<8x1024xf32>
    %29 = vector.extract_strided_slice %4 {offsets = [0, 4], sizes = [8, 1], strides = [1, 1]} : vector<8x9xf32> to vector<8x1xf32>
    %30 = vector.broadcast %29 : vector<8x1xf32> to vector<8x1024xf32>
    %31 = arith.mulf %28, %30 : vector<8x1024xf32>
    %32 = arith.addf %26, %31 : vector<8x1024xf32>
    %c1087_i32 = arith.constant 1087 : i32
    %33 = tpu.dynamic_rotate %3 by %c1087_i32 dim 1 : vector<8x1152xf32>, i32 -> vector<8x1152xf32>
    %34 = vector.extract_strided_slice %33 {offsets = [0, 0], sizes = [8, 1024], strides = [1, 1]} : vector<8x1152xf32> to vector<8x1024xf32>
    %35 = vector.extract_strided_slice %4 {offsets = [0, 5], sizes = [8, 1], strides = [1, 1]} : vector<8x9xf32> to vector<8x1xf32>
    %36 = vector.broadcast %35 : vector<8x1xf32> to vector<8x1024xf32>
    %37 = arith.mulf %34, %36 : vector<8x1024xf32>
    %38 = arith.addf %32, %37 : vector<8x1024xf32>
    %c1025_i32 = arith.constant 1025 : i32
    %39 = tpu.dynamic_rotate %3 by %c1025_i32 dim 1 : vector<8x1152xf32>, i32 -> vector<8x1152xf32>
    %40 = vector.extract_strided_slice %39 {offsets = [0, 0], sizes = [8, 1024], strides = [1, 1]} : vector<8x1152xf32> to vector<8x1024xf32>
    %41 = vector.extract_strided_slice %4 {offsets = [0, 6], sizes = [8, 1], strides = [1, 1]} : vector<8x9xf32> to vector<8x1xf32>
    %42 = vector.broadcast %41 : vector<8x1xf32> to vector<8x1024xf32>
    %43 = arith.mulf %40, %42 : vector<8x1024xf32>
    %44 = arith.addf %38, %43 : vector<8x1024xf32>
    %c1024_i32 = arith.constant 1024 : i32
    %45 = tpu.dynamic_rotate %3 by %c1024_i32 dim 1 : vector<8x1152xf32>, i32 -> vector<8x1152xf32>
    %46 = vector.extract_strided_slice %45 {offsets = [0, 0], sizes = [8, 1024], strides = [1, 1]} : vector<8x1152xf32> to vector<8x1024xf32>
    %47 = vector.extract_strided_slice %4 {offsets = [0, 7], sizes = [8, 1], strides = [1, 1]} : vector<8x9xf32> to vector<8x1xf32>
    %48 = vector.broadcast %47 : vector<8x1xf32> to vector<8x1024xf32>
    %49 = arith.mulf %46, %48 : vector<8x1024xf32>
    %50 = arith.addf %44, %49 : vector<8x1024xf32>
    %c1023_i32 = arith.constant 1023 : i32
    %51 = tpu.dynamic_rotate %3 by %c1023_i32 dim 1 : vector<8x1152xf32>, i32 -> vector<8x1152xf32>
    %52 = vector.extract_strided_slice %51 {offsets = [0, 0], sizes = [8, 1024], strides = [1, 1]} : vector<8x1152xf32> to vector<8x1024xf32>
    %53 = vector.extract_strided_slice %4 {offsets = [0, 8], sizes = [8, 1], strides = [1, 1]} : vector<8x9xf32> to vector<8x1xf32>
    %54 = vector.broadcast %53 : vector<8x1xf32> to vector<8x1024xf32>
    %55 = arith.mulf %52, %54 : vector<8x1024xf32>
    %56 = arith.addf %50, %55 : vector<8x1024xf32>
    %c0_7 = arith.constant 0 : index
    %c0_8 = arith.constant 0 : index
    %57 = vector.load %arg5[%c0_7, %c0_8] : memref<8x1xf32, #tpu.memory_space<vmem>>, vector<8x1xf32>
    %58 = vector.broadcast %57 : vector<8x1xf32> to vector<8x1024xf32>
    %59 = arith.addf %56, %58 : vector<8x1024xf32>
    %c0_9 = arith.constant 0 : index
    %c0_10 = arith.constant 0 : index
    %c0_11 = arith.constant 0 : index
    %60 = vector.load %arg6[%c0_9, %c0_10, %c0_11] : memref<1x8x1024xf32, #tpu.memory_space<vmem>>, vector<1x8x1024xf32>
    %61 = vector.shape_cast %60 : vector<1x8x1024xf32> to vector<8x1024xf32>
    %62 = vector.shape_cast %59 : vector<8x1024xf32> to vector<1x8x1024xf32>
    tpu.vector_store %arg6[%c0_9, %c0_10, %c0_11], %62 {strides = array<i32>} : memref<1x8x1024xf32, #tpu.memory_space<vmem>>, vector<1x8x1024xf32>,
    return
  }
  func.func @transform_0(%arg0: i32, %arg1: i32) -> (i32, i32, i32, i32) {
    %c0_i32 = arith.constant 0 : i32
    %c0_i32_0 = arith.constant 0 : i32
    %c0_i32_1 = arith.constant 0 : i32
    return %arg0, %arg1, %c0_i32, %c0_i32_0 : i32, i32, i32, i32
  }
  func.func @transform_1(%arg0: i32, %arg1: i32) -> (i32, i32) {
    %c0_i32 = arith.constant 0 : i32
    %c0_i32_0 = arith.constant 0 : i32
    %c0_i32_1 = arith.constant 0 : i32
    return %c0_i32, %c0_i32_0 : i32, i32
  }
  func.func @transform_2(%arg0: i32, %arg1: i32) -> (i32, i32) {
    %c0_i32 = arith.constant 0 : i32
    %c0_i32_0 = arith.constant 0 : i32
    %c0_i32_1 = arith.constant 0 : i32
    return %c0_i32, %c0_i32_0 : i32, i32
  }
  func.func @transform_3(%arg0: i32, %arg1: i32) -> (i32, i32) {
    %c0_i32 = arith.constant 0 : i32
    %c0_i32_0 = arith.constant 0 : i32
    %c0_i32_1 = arith.constant 0 : i32
    return %c0_i32, %c0_i32_0 : i32, i32
  }
  func.func @transform_4(%arg0: i32, %arg1: i32) -> (i32, i32, i32) {
    %c0_i32 = arith.constant 0 : i32
    %c0_i32_0 = arith.constant 0 : i32
    return %arg0, %c0_i32, %arg1 : i32, i32, i32
  }
}

</mosaic_0001>

<llo_original>
// kernel: bsconvu_forward.1
$region0: #{bsconvu_forward.1}
  #allocation0 [shape = 'u32[]', space=smem, size = 0x4, offset = 0x4, fixed_abs, tag = 'smem constant byte address 0x4 - core index']
  #allocation1 [shape = 'u32[144,128]{1,0:T(1,128)}', space=vmem, size = 0x12000, scoped, tag = 'internal scratch']
  %s0 = inlined_call_operand.vmem [shape: f32[2,1,4,1152], index: 0, kind: input, shape index: {}]
  %s1 = inlined_call_operand.vmem [shape: f32[8,4], index: 1, kind: input, shape index: {}]
  %s2 = inlined_call_operand.vmem [shape: f32[8,9], index: 2, kind: input, shape index: {}]
  %s3 = inlined_call_operand.vmem [shape: f32[8,1], index: 3, kind: input, shape index: {}]
  %s4 = inlined_call_operand.vmem [shape: f32[2,8,1024], index: 4, kind: output, shape index: {}]
  %s5 = sld [smem:[#allocation0]]
  $region49: #{bsconvu_forward.1} parent=0
    _
  %s7 = ssub.s32 1, %s5
  %s8 = scalar_select 0, %s7, %s5
  loop: start=0, step=1, limit=4
  $region2: #{bsconvu_forward.1} parent=0 // loop_pre_header
    _
  $region3: #{bsconvu_forward.1} parent=0 // loop_header
    %s10 = sphi 0, %s14
    %p11 = scmp.ge.s32.totalorder %s10, 4
    %s17 = sphi 0, %s29
    %s18 = sphi 0, %s25
    %s19 = sphi 0, %s17
    %s20 = sphi 0, %s18
    %s21 = sphi 0, %s19
    %s22 = sphi 0, %s20
    %s34 = sphi 0, %s36
    %s37 = sphi 0, %s34
    %s38 = sphi 0, %s37
    %s54 = sphi 0, %s38
    %s58 = sphi 0, %s58
    %s60 = sphi 0, %s58
    %s61 = sphi 0, %s60
    %s75 = sphi 0, %s61
    %s79 = sphi 0, %s79
    %s81 = sphi 0, %s79
    %s82 = sphi 0, %s81
    %s96 = sphi 0, %s82
    %s100 = sphi 0, %s100
    %s102 = sphi 0, %s100
    %s103 = sphi 0, %s102
    %s117 = sphi 0, %s103
    %s125 = sphi 0, %s127
    %s128 = sphi 0, %s125
    %s129 = sphi 0, %s128
    %s145 = sphi 0, %s129
  $region4: #{bsconvu_forward.1} parent=0 // loop_header_branch
    %13 = sbr.rel (%p11) target = $region8
  $region5: #{bsconvu_forward.1} parent=0 // loop_body
    %s15 = ssub.s32 %s10, 1
    %s16 = ssub.s32 %s10, 2
    %s23 = sadd.s32 1, %s18
    %p24 = scmp.ge.s32.totalorder %s23, 1
    %s25 = scalar_select %p24, 0, %s23
    %s26 = sadd.s32 1, %s17
    %s27 = scalar_select %p24, %s26, %s17
    %p28 = scmp.ge.s32.totalorder %s27, 2
    %s29 = scalar_select %p28, 0, %s27
    %s30 = ssub.s32 %s17, %s29
    %s31 = ssub.s32 %s18, %s25
    %s32 = sor.u32 %s30, %s31
    %p33 = scmp.eq.s32.totalorder %s32, 0
    %s35 = sadd.s32 %s34, 1
    %s36 = scalar_select %p33, %s34, %s35
    %p39 = pneg %p33
    %p40 = scmp.eq.s32.totalorder %s10, 1
    %p41 = por %p39, %p40
    %p42 = scmp.ne.s32.totalorder %s34, %s37
    %p43 = scmp.eq.s32.totalorder %s10, 0
    %p44 = por %p42, %p43
    %p45 = scmp.ne.s32.totalorder %s34, %s37
    %p46 = scmp.eq.s32.totalorder %s15, 1
    %p47 = por %p45, %p46
    %p48 = scmp.ne.s32.totalorder %s37, %s38
    %p49 = scmp.eq.s32.totalorder %s15, 0
    %p50 = por %p48, %p49
    %p51 = scmp.ne.s32.totalorder %s37, %s38
    %p52 = scmp.eq.s32.totalorder %s16, 1
    %p53 = por %p51, %p52
    %p55 = scmp.ne.s32.totalorder %s38, %s54
    %p56 = scmp.eq.s32.totalorder %s16, 0
    %p57 = por %p55, %p56
    %s59 = sadd.s32 %s58, 1
    %p62 = scmp.eq.s32.totalorder %s10, 1
    %p63 = scmp.ne.s32.totalorder %s58, %s60
    %p64 = scmp.eq.s32.totalorder %s10, 0
    %p65 = por %p63, %p64
    %p66 = scmp.ne.s32.totalorder %s58, %s60
    %p67 = scmp.eq.s32.totalorder %s15, 1
    %p68 = por %p66, %p67
    %p69 = scmp.ne.s32.totalorder %s60, %s61
    %p70 = scmp.eq.s32.totalorder %s15, 0
    %p71 = por %p69, %p70
    %p72 = scmp.ne.s32.totalorder %s60, %s61
    %p73 = scmp.eq.s32.totalorder %s16, 1
    %p74 = por %p72, %p73
    %p76 = scmp.ne.s32.totalorder %s61, %s75
    %p77 = scmp.eq.s32.totalorder %s16, 0
    %p78 = por %p76, %p77
    %s80 = sadd.s32 %s79, 1
    %p83 = scmp.eq.s32.totalorder %s10, 1
    %p84 = scmp.ne.s32.totalorder %s79, %s81
    %p85 = scmp.eq.s32.totalorder %s10, 0
    %p86 = por %p84, %p85
    %p87 = scmp.ne.s32.totalorder %s79, %s81
    %p88 = scmp.eq.s32.totalorder %s15, 1
    %p89 = por %p87, %p88
    %p90 = scmp.ne.s32.totalorder %s81, %s82
    %p91 = scmp.eq.s32.totalorder %s15, 0
    %p92 = por %p90, %p91
    %p93 = scmp.ne.s32.totalorder %s81, %s82
    %p94 = scmp.eq.s32.totalorder %s16, 1
    %p95 = por %p93, %p94
    %p97 = scmp.ne.s32.totalorder %s82, %s96
    %p98 = scmp.eq.s32.totalorder %s16, 0
    %p99 = por %p97, %p98
    %s101 = sadd.s32 %s100, 1
    %p104 = scmp.eq.s32.totalorder %s10, 1
    %p105 = scmp.ne.s32.totalorder %s100, %s102
    %p106 = scmp.eq.s32.totalorder %s10, 0
    %p107 = por %p105, %p106
    %p108 = scmp.ne.s32.totalorder %s100, %s102
    %p109 = scmp.eq.s32.totalorder %s15, 1
    %p110 = por %p108, %p109
    %p111 = scmp.ne.s32.totalorder %s102, %s103
    %p112 = scmp.eq.s32.totalorder %s15, 0
    %p113 = por %p111, %p112
    %p114 = scmp.ne.s32.totalorder %s102, %s103
    %p115 = scmp.eq.s32.totalorder %s16, 1
    %p116 = por %p114, %p115
    %p118 = scmp.ne.s32.totalorder %s103, %s117
    %p119 = scmp.eq.s32.totalorder %s16, 0
    %p120 = por %p118, %p119
    %s121 = ssub.s32 %s17, %s29
    %s122 = ssub.s32 %s18, %s25
    %s123 = sor.u32 %s121, %s122
    %p124 = scmp.eq.s32.totalorder %s123, 0
    %s126 = sadd.s32 %s125, 1
    %s127 = scalar_select %p124, %s125, %s126
    %p130 = pneg %p124
    %p131 = scmp.eq.s32.totalorder %s10, 1
    %p132 = por %p130, %p131
    %p133 = scmp.ne.s32.totalorder %s125, %s128
    %p134 = scmp.eq.s32.totalorder %s10, 0
    %p135 = por %p133, %p134
    %p136 = scmp.ne.s32.totalorder %s125, %s128
    %p137 = scmp.eq.s32.totalorder %s15, 1
    %p138 = por %p136, %p137
    %p139 = scmp.ne.s32.totalorder %s128, %s129
    %p140 = scmp.eq.s32.totalorder %s15, 0
    %p141 = por %p139, %p140
    %p142 = scmp.ne.s32.totalorder %s128, %s129
    %p143 = scmp.eq.s32.totalorder %s16, 1
    %p144 = por %p142, %p143
    %p146 = scmp.ne.s32.totalorder %s129, %s145
    %p147 = scmp.eq.s32.totalorder %s16, 0
    %p148 = por %p146, %p147
    %p149 = scmp.le.s32.totalorder 1, %s10
    %p150 = scmp.lt.s32.totalorder %s10, 3
    %p151 = pnand %p149, %p150
    %p152 = pneg %p151
    // Predicated region
    $region9: #{bsconvu_forward.1} parent=5 // pred_check
      _
    $region10: #{bsconvu_forward.1} parent=5 // pred_check_branch
      %154 = sbr.rel (%p151) target = $region12
    $region11: #{bsconvu_forward.1} parent=5 // pred_region
      %s155 = ssub.s32 %s10, 1
      // Predicated region
      $region13: #{bsconvu_forward.1} parent=11 // pred_check
        %p156 = pneg %p71
      $region14: #{bsconvu_forward.1} parent=11 // pred_check_branch
        %158 = sbr.rel (%p156) target = $region16
      $region15: #{bsconvu_forward.1} parent=11 // pred_region
        _
      $region16: #{bsconvu_forward.1} parent=11 // pred_fallthru
        _
      // Predicated region
      $region17: #{bsconvu_forward.1} parent=11 // pred_check
        %p159 = pneg %p92
      $region18: #{bsconvu_forward.1} parent=11 // pred_check_branch
        %161 = sbr.rel (%p159) target = $region20
      $region19: #{bsconvu_forward.1} parent=11 // pred_region
        _
      $region20: #{bsconvu_forward.1} parent=11 // pred_fallthru
        _
      // Predicated region
      $region21: #{bsconvu_forward.1} parent=11 // pred_check
        %p162 = pneg %p113
      $region22: #{bsconvu_forward.1} parent=11 // pred_check_branch
        %164 = sbr.rel (%p162) target = $region24
      $region23: #{bsconvu_forward.1} parent=11 // pred_region
        _
      $region24: #{bsconvu_forward.1} parent=11 // pred_fallthru
        _
    $region12: #{bsconvu_forward.1} parent=5 // pred_fallthru
      _
    %p165 = scmp.lt.s32.totalorder %s10, 2
    // Predicated region
    $region25: #{bsconvu_forward.1} parent=5 // pred_check
      %p166 = pneg %p165
    $region26: #{bsconvu_forward.1} parent=5 // pred_check_branch
      %168 = sbr.rel (%p166) target = $region28
    $region27: #{bsconvu_forward.1} parent=5 // pred_region
      // Predicated region
      $region29: #{bsconvu_forward.1} parent=27 // pred_check
        %p169 = pneg %p44
      $region30: #{bsconvu_forward.1} parent=27 // pred_check_branch
        %171 = sbr.rel (%p169) target = $region32
      $region31: #{bsconvu_forward.1} parent=27 // pred_region
        %p172 = scmp.lt.s32.totalorder %s17, 1
        %s173 = scalar_select %p172, %s17, 1
        %p174 = scmp.lt.s32.totalorder %s18, 0
        %s175 = scalar_select %p174, %s18, 0
        %s176 = smul.addr %s175, 9
        %s177 = smul.addr %s173, 9
        %s178 = sadd.s32 %s176, %s177
        %s179 = smul.addr %s178, 4
        %s180 = scalar_lea.vmem %s0, %s179
      $region32: #{bsconvu_forward.1} parent=27 // pred_fallthru
        _
    $region28: #{bsconvu_forward.1} parent=5 // pred_fallthru
      _
    %p181 = scmp.le.s32.totalorder 1, %s10
    %p182 = scmp.lt.s32.totalorder %s10, 3
    %p183 = pnand %p181, %p182
    %p184 = pneg %p183
    // Predicated region
    $region33: #{bsconvu_forward.1} parent=5 // pred_check
      _
    $region34: #{bsconvu_forward.1} parent=5 // pred_check_branch
      %186 = sbr.rel (%p183) target = $region36
    $region35: #{bsconvu_forward.1} parent=5 // pred_region
      %s187 = ssub.s32 %s10, 1
      %p188 = scmp.lt.s32.totalorder %s19, 1
      %s189 = scalar_select %p188, %s19, 1
      %p190 = scmp.lt.s32.totalorder %s20, 0
      %s191 = scalar_select %p190, %s20, 0
      %s192 = smul.addr %s191, 9
      %s193 = smul.addr %s189, 9
      %s194 = sadd.s32 %s192, %s193
      %s195 = smul.addr %s194, 4
      %s196 = scalar_lea.vmem %s0, %s195
      %p197 = pneg %p50
      %p198 = pneg %p47
      %p199 = pneg %p71
      %p200 = pneg %p68
      %p201 = pneg %p92
      %p202 = pneg %p89
      %p203 = pneg %p113
      %p204 = pneg %p110
      %p205 = pneg %p141
      %p206 = pneg %p138
      %s207 = smul.u32 8, %s20
      %p208 = scmp.lt.s32.totalorder %s19, 1
      %s209 = scalar_select %p208, %s19, 1
      %p210 = scmp.lt.s32.totalorder %s207, 7
      %s211 = scalar_select %p210, %s207, 7
      %s212 = smul.addr %s209, 8
      %s213 = sadd.s32 %s211, %s212
      %s214 = smul.addr %s213, 8
      %s215 = scalar_lea.vmem %s4, %s214
      %p216 = scmp.lt.s32.totalorder %s19, 1
      %s217 = scalar_select %p216, %s19, 1
      %p218 = scmp.lt.s32.totalorder %s20, 0
      %s219 = scalar_select %p218, %s20, 0
      %s220 = smul.addr %s219, 9
      %s221 = smul.addr %s217, 9
      %s222 = sadd.s32 %s220, %s221
      %s223 = smul.addr %s222, 4
      %s224 = scalar_lea.vmem %s0, %s223
      %s225 = smul.u32 8, %s20
      %p226 = scmp.lt.s32.totalorder %s19, 1
      %s227 = scalar_select %p226, %s19, 1
      %p228 = scmp.lt.s32.totalorder %s225, 7
      %s229 = scalar_select %p228, %s225, 7
      %s230 = smul.addr %s227, 8
      %s231 = sadd.s32 %s229, %s230
      %s232 = smul.addr %s231, 8
      %s233 = scalar_lea.vmem %s4, %s232
      %s234 = smul.u32 8, %s20
      %v235 = vld [vmem:[%s224] sm:$0xff]
      %v236 = vld [vmem:[%s224 + $0x8] sm:$0xff]
      %v237 = vld [vmem:[%s224 + $0x10] sm:$0xff]
      %v238 = vld [vmem:[%s224 + $0x18] sm:$0xff]
      %v239 = vld [vmem:[%s224 + $0x20] sm:$0xf]
      %v240 = vld [vmem:[%s1] sm:$0xff]
      %v246 = vcombine.high %v235, %v235
      %v247 = vcombine.high %v236, %v236
      %v248 = vcombine.high %v237, %v237
      %v249 = vcombine.high %v238, %v238
      %vm250 = vcmask 31744
      %v252 = vsel %vm250, %v240, 0
      %vm254 = vcmask 1043456
      %v255 = vsel %vm254, %v235, 0
      %v257 = vsel %vm254, %v246, 0
      %v259 = vsel %vm254, %v236, 0
      %v261 = vsel %vm254, %v247, 0
      %v263 = vsel %vm254, %v237, 0
      %v265 = vsel %vm254, %v248, 0
      %v267 = vsel %vm254, %v238, 0
      %v269 = vsel %vm254, %v249, 0
      %v271 = vsel %vm254, %v239, 0
      %273 = vmatprep.subr.mxu0 0.0
      %274 = vmatpush1.msra.mxu0 0.0
      %275 = vmatprep.subr.mxu0 0.0
      %276 = vmatpush1.msra.mxu0 0.0
      %277 = vmatprep.subr.mxu0 0.0
      %278 = vmatpush1.msra.mxu0 0.0
      %279 = vmatprep.subr.mxu0 0.0
      %280 = vmatpush1.msra.mxu0 0.0
      %281 = vmatprep.subr.mxu0 0.0
      %282 = vmatpush1.msra.mxu0 0.0
      %283 = vmatprep.subr.mxu0 0.0
      %284 = vmatpush1.msra.mxu0 0.0
      %285 = vmatprep.subr.mxu0 0.0
      %286 = vmatpush1.msra.mxu0 0.0
      %287 = vmatprep.subr.mxu0 0.0
      %288 = vmatpush1.msra.mxu0 0.0
      %289 = vmatprep.subr.mxu0 0.0
      %290 = vmatpush1.msra.mxu0 0.0
      %291 = vmatprep.subr.mxu0 0.0
      %292 = vmatpush1.msra.mxu0 0.0
      %293 = vmatprep.subr.mxu0 0.0
      %294 = vmatpush1.msra.mxu0 0.0
      %295 = vmatprep.subr.mxu0 0.0
      %296 = vmatpush1.msra.mxu0 0.0
      %297 = vmatprep.subr.mxu0 0.0
      %298 = vmatpush1.msra.mxu0 0.0
      %299 = vmatprep.subr.mxu0 0.0
      %300 = vmatpush1.msra.mxu0 0.0
      %301 = vmatprep.subr.mxu0 0.0
      %302 = vmatpush1.msra.mxu0 0.0
      %303 = vmatprep.subr.mxu0 %v257
      %304 = vmatpush1.msra.mxu0 %v255
      %305 = vmatprep.subr.mxu0 0.0
      %306 = vmatpush2.msra.mxu0 0.0
      %307 = vmatprep.subr.mxu0 0.0
      %308 = vmatpush2.msra.mxu0 0.0
      %309 = vmatprep.subr.mxu0 0.0
      %310 = vmatpush2.msra.mxu0 0.0
      %311 = vmatprep.subr.mxu0 0.0
      %312 = vmatpush2.msra.mxu0 0.0
      %313 = vmatprep.subr.mxu0 0.0
      %314 = vmatpush2.msra.mxu0 0.0
      %315 = vmatprep.subr.mxu0 0.0
      %316 = vmatpush2.msra.mxu0 0.0
      %317 = vmatprep.subr.mxu0 0.0
      %318 = vmatpush2.msra.mxu0 0.0
      %319 = vmatprep.subr.mxu0 0.0
      %320 = vmatpush2.msra.mxu0 0.0
      %321 = vmatprep.subr.mxu0 0.0
      %322 = vmatpush2.msra.mxu0 0.0
      %323 = vmatprep.subr.mxu0 0.0
      %324 = vmatpush2.msra.mxu0 0.0
      %325 = vmatprep.subr.mxu0 0.0
      %326 = vmatpush2.msra.mxu0 0.0
      %327 = vmatprep.subr.mxu0 0.0
      %328 = vmatpush2.msra.mxu0 0.0
      %329 = vmatprep.subr.mxu0 0.0
      %330 = vmatpush2.msra.mxu0 0.0
      %331 = vmatprep.subr.mxu0 0.0
      %332 = vmatpush2.msra.mxu0 0.0
      %333 = vmatprep.subr.mxu0 0.0
      %334 = vmatpush2.msra.mxu0 0.0
      %335 = vmatprep.subr.mxu0 0.0
      %336 = vmatpush2.msra.mxu0 0.0
      %337 = vmatprep.mubr.f32.mxu0 0.0
      %338 = vmatmul.mubr.f32.gmra.mxu0 %v252
      %v339 = vpop.f32.mrf.mxu0
      %v340 = vadd.f32 0.0, %v339
      %v341 = vpop.f32.mrf.mxu0
      %v342 = vadd.f32 0.0, %v341
      %343 = vdwg.mxu0
      %344 = vmatprep.subr.mxu0 0.0
      %345 = vmatpush1.msra.mxu0 0.0
      %346 = vmatprep.subr.mxu0 0.0
      %347 = vmatpush1.msra.mxu0 0.0
      %348 = vmatprep.subr.mxu0 0.0
      %349 = vmatpush1.msra.mxu0 0.0
      %350 = vmatprep.subr.mxu0 0.0
      %351 = vmatpush1.msra.mxu0 0.0
      %352 = vmatprep.subr.mxu0 0.0
      %353 = vmatpush1.msra.mxu0 0.0
      %354 = vmatprep.subr.mxu0 0.0
      %355 = vmatpush1.msra.mxu0 0.0
      %356 = vmatprep.subr.mxu0 0.0
      %357 = vmatpush1.msra.mxu0 0.0
      %358 = vmatprep.subr.mxu0 0.0
      %359 = vmatpush1.msra.mxu0 0.0
      %360 = vmatprep.subr.mxu0 0.0
      %361 = vmatpush1.msra.mxu0 0.0
      %362 = vmatprep.subr.mxu0 0.0
      %363 = vmatpush1.msra.mxu0 0.0
      %364 = vmatprep.subr.mxu0 0.0
      %365 = vmatpush1.msra.mxu0 0.0
      %366 = vmatprep.subr.mxu0 0.0
      %367 = vmatpush1.msra.mxu0 0.0
      %368 = vmatprep.subr.mxu0 0.0
      %369 = vmatpush1.msra.mxu0 0.0
      %370 = vmatprep.subr.mxu0 0.0
      %371 = vmatpush1.msra.mxu0 0.0
      %372 = vmatprep.subr.mxu0 0.0
      %373 = vmatpush1.msra.mxu0 0.0
      %374 = vmatprep.subr.mxu0 %v261
      %375 = vmatpush1.msra.mxu0 %v259
      %376 = vmatprep.subr.mxu0 0.0
      %377 = vmatpush2.msra.mxu0 0.0
      %378 = vmatprep.subr.mxu0 0.0
      %379 = vmatpush2.msra.mxu0 0.0
      %380 = vmatprep.subr.mxu0 0.0
      %381 = vmatpush2.msra.mxu0 0.0
      %382 = vmatprep.subr.mxu0 0.0
      %383 = vmatpush2.msra.mxu0 0.0
      %384 = vmatprep.subr.mxu0 0.0
      %385 = vmatpush2.msra.mxu0 0.0
      %386 = vmatprep.subr.mxu0 0.0
      %387 = vmatpush2.msra.mxu0 0.0
      %388 = vmatprep.subr.mxu0 0.0
      %389 = vmatpush2.msra.mxu0 0.0
      %390 = vmatprep.subr.mxu0 0.0
      %391 = vmatpush2.msra.mxu0 0.0
      %392 = vmatprep.subr.mxu0 0.0
      %393 = vmatpush2.msra.mxu0 0.0
      %394 = vmatprep.subr.mxu0 0.0
      %395 = vmatpush2.msra.mxu0 0.0
      %396 = vmatprep.subr.mxu0 0.0
      %397 = vmatpush2.msra.mxu0 0.0
      %398 = vmatprep.subr.mxu0 0.0
      %399 = vmatpush2.msra.mxu0 0.0
      %400 = vmatprep.subr.mxu0 0.0
      %401 = vmatpush2.msra.mxu0 0.0
      %402 = vmatprep.subr.mxu0 0.0
      %403 = vmatpush2.msra.mxu0 0.0
      %404 = vmatprep.subr.mxu0 0.0
      %405 = vmatpush2.msra.mxu0 0.0
      %406 = vmatprep.subr.mxu0 0.0
      %407 = vmatpush2.msra.mxu0 0.0
      %408 = vmatprep.mubr.f32.mxu0 0.0
      %409 = vmatmul.mubr.f32.gmra.mxu0 %v252
      %v410 = vpop.f32.mrf.mxu0
      %v411 = vadd.f32 0.0, %v410
      %v412 = vpop.f32.mrf.mxu0
      %v413 = vadd.f32 0.0, %v412
      %414 = vdwg.mxu0
      %415 = vmatprep.subr.mxu0 0.0
      %416 = vmatpush1.msra.mxu0 0.0
      %417 = vmatprep.subr.mxu0 0.0
      %418 = vmatpush1.msra.mxu0 0.0
      %419 = vmatprep.subr.mxu0 0.0
      %420 = vmatpush1.msra.mxu0 0.0
      %421 = vmatprep.subr.mxu0 0.0
      %422 = vmatpush1.msra.mxu0 0.0
      %423 = vmatprep.subr.mxu0 0.0
      %424 = vmatpush1.msra.mxu0 0.0
      %425 = vmatprep.subr.mxu0 0.0
      %426 = vmatpush1.msra.mxu0 0.0
      %427 = vmatprep.subr.mxu0 0.0
      %428 = vmatpush1.msra.mxu0 0.0
      %429 = vmatprep.subr.mxu0 0.0
      %430 = vmatpush1.msra.mxu0 0.0
      %431 = vmatprep.subr.mxu0 0.0
      %432 = vmatpush1.msra.mxu0 0.0
      %433 = vmatprep.subr.mxu0 0.0
      %434 = vmatpush1.msra.mxu0 0.0
      %435 = vmatprep.subr.mxu0 0.0
      %436 = vmatpush1.msra.mxu0 0.0
      %437 = vmatprep.subr.mxu0 0.0
      %438 = vmatpush1.msra.mxu0 0.0
      %439 = vmatprep.subr.mxu0 0.0
      %440 = vmatpush1.msra.mxu0 0.0
      %441 = vmatprep.subr.mxu0 0.0
      %442 = vmatpush1.msra.mxu0 0.0
      %443 = vmatprep.subr.mxu0 0.0
      %444 = vmatpush1.msra.mxu0 0.0
      %445 = vmatprep.subr.mxu0 %v265
      %446 = vmatpush1.msra.mxu0 %v263
      %447 = vmatprep.subr.mxu0 0.0
      %448 = vmatpush2.msra.mxu0 0.0
      %449 = vmatprep.subr.mxu0 0.0
      %450 = vmatpush2.msra.mxu0 0.0
      %451 = vmatprep.subr.mxu0 0.0
      %452 = vmatpush2.msra.mxu0 0.0
      %453 = vmatprep.subr.mxu0 0.0
      %454 = vmatpush2.msra.mxu0 0.0
      %455 = vmatprep.subr.mxu0 0.0
      %456 = vmatpush2.msra.mxu0 0.0
      %457 = vmatprep.subr.mxu0 0.0
      %458 = vmatpush2.msra.mxu0 0.0
      %459 = vmatprep.subr.mxu0 0.0
      %460 = vmatpush2.msra.mxu0 0.0
      %461 = vmatprep.subr.mxu0 0.0
      %462 = vmatpush2.msra.mxu0 0.0
      %463 = vmatprep.subr.mxu0 0.0
      %464 = vmatpush2.msra.mxu0 0.0
      %465 = vmatprep.subr.mxu0 0.0
      %466 = vmatpush2.msra.mxu0 0.0
      %467 = vmatprep.subr.mxu0 0.0
      %468 = vmatpush2.msra.mxu0 0.0
      %469 = vmatprep.subr.mxu0 0.0
      %470 = vmatpush2.msra.mxu0 0.0
      %471 = vmatprep.subr.mxu0 0.0
      %472 = vmatpush2.msra.mxu0 0.0
      %473 = vmatprep.subr.mxu0 0.0
      %474 = vmatpush2.msra.mxu0 0.0
      %475 = vmatprep.subr.mxu0 0.0
      %476 = vmatpush2.msra.mxu0 0.0
      %477 = vmatprep.subr.mxu0 0.0
      %478 = vmatpush2.msra.mxu0 0.0
      %479 = vmatprep.mubr.f32.mxu0 0.0
      %480 = vmatmul.mubr.f32.gmra.mxu0 %v252
      %v481 = vpop.f32.mrf.mxu0
      %v482 = vadd.f32 0.0, %v481
      %v483 = vpop.f32.mrf.mxu0
      %v484 = vadd.f32 0.0, %v483
      %485 = vdwg.mxu0
      %486 = vmatprep.subr.mxu0 0.0
      %487 = vmatpush1.msra.mxu0 0.0
      %488 = vmatprep.subr.mxu0 0.0
      %489 = vmatpush1.msra.mxu0 0.0
      %490 = vmatprep.subr.mxu0 0.0
      %491 = vmatpush1.msra.mxu0 0.0
      %492 = vmatprep.subr.mxu0 0.0
      %493 = vmatpush1.msra.mxu0 0.0
      %494 = vmatprep.subr.mxu0 0.0
      %495 = vmatpush1.msra.mxu0 0.0
      %496 = vmatprep.subr.mxu0 0.0
      %497 = vmatpush1.msra.mxu0 0.0
      %498 = vmatprep.subr.mxu0 0.0
      %499 = vmatpush1.msra.mxu0 0.0
      %500 = vmatprep.subr.mxu0 0.0
      %501 = vmatpush1.msra.mxu0 0.0
      %502 = vmatprep.subr.mxu0 0.0
      %503 = vmatpush1.msra.mxu0 0.0
      %504 = vmatprep.subr.mxu0 0.0
      %505 = vmatpush1.msra.mxu0 0.0
      %506 = vmatprep.subr.mxu0 0.0
      %507 = vmatpush1.msra.mxu0 0.0
      %508 = vmatprep.subr.mxu0 0.0
      %509 = vmatpush1.msra.mxu0 0.0
      %510 = vmatprep.subr.mxu0 0.0
      %511 = vmatpush1.msra.mxu0 0.0
      %512 = vmatprep.subr.mxu0 0.0
      %513 = vmatpush1.msra.mxu0 0.0
      %514 = vmatprep.subr.mxu0 0.0
      %515 = vmatpush1.msra.mxu0 0.0
      %516 = vmatprep.subr.mxu0 %v269
      %517 = vmatpush1.msra.mxu0 %v267
      %518 = vmatprep.subr.mxu0 0.0
      %519 = vmatpush2.msra.mxu0 0.0
      %520 = vmatprep.subr.mxu0 0.0
      %521 = vmatpush2.msra.mxu0 0.0
      %522 = vmatprep.subr.mxu0 0.0
      %523 = vmatpush2.msra.mxu0 0.0
      %524 = vmatprep.subr.mxu0 0.0
      %525 = vmatpush2.msra.mxu0 0.0
      %526 = vmatprep.subr.mxu0 0.0
      %527 = vmatpush2.msra.mxu0 0.0
      %528 = vmatprep.subr.mxu0 0.0
      %529 = vmatpush2.msra.mxu0 0.0
      %530 = vmatprep.subr.mxu0 0.0
      %531 = vmatpush2.msra.mxu0 0.0
      %532 = vmatprep.subr.mxu0 0.0
      %533 = vmatpush2.msra.mxu0 0.0
      %534 = vmatprep.subr.mxu0 0.0
      %535 = vmatpush2.msra.mxu0 0.0
      %536 = vmatprep.subr.mxu0 0.0
      %537 = vmatpush2.msra.mxu0 0.0
      %538 = vmatprep.subr.mxu0 0.0
      %539 = vmatpush2.msra.mxu0 0.0
      %540 = vmatprep.subr.mxu0 0.0
      %541 = vmatpush2.msra.mxu0 0.0
      %542 = vmatprep.subr.mxu0 0.0
      %543 = vmatpush2.msra.mxu0 0.0
      %544 = vmatprep.subr.mxu0 0.0
      %545 = vmatpush2.msra.mxu0 0.0
      %546 = vmatprep.subr.mxu0 0.0
      %547 = vmatpush2.msra.mxu0 0.0
      %548 = vmatprep.subr.mxu0 0.0
      %549 = vmatpush2.msra.mxu0 0.0
      %550 = vmatprep.mubr.f32.mxu0 0.0
      %551 = vmatmul.mubr.f32.gmra.mxu0 %v252
      %v552 = vpop.f32.mrf.mxu0
      %v553 = vadd.f32 0.0, %v552
      %v554 = vpop.f32.mrf.mxu0
      %v555 = vadd.f32 0.0, %v554
      %556 = vdwg.mxu0
      %557 = vmatprep.subr.mxu0 0.0
      %558 = vmatpush1.msra.mxu0 0.0
      %559 = vmatprep.subr.mxu0 0.0
      %560 = vmatpush1.msra.mxu0 0.0
      %561 = vmatprep.subr.mxu0 0.0
      %562 = vmatpush1.msra.mxu0 0.0
      %563 = vmatprep.subr.mxu0 0.0
      %564 = vmatpush1.msra.mxu0 0.0
      %565 = vmatprep.subr.mxu0 0.0
      %566 = vmatpush1.msra.mxu0 0.0
      %567 = vmatprep.subr.mxu0 0.0
      %568 = vmatpush1.msra.mxu0 0.0
      %569 = vmatprep.subr.mxu0 0.0
      %570 = vmatpush1.msra.mxu0 0.0
      %571 = vmatprep.subr.mxu0 0.0
      %572 = vmatpush1.msra.mxu0 0.0
      %573 = vmatprep.subr.mxu0 0.0
      %574 = vmatpush1.msra.mxu0 0.0
      %575 = vmatprep.subr.mxu0 0.0
      %576 = vmatpush1.msra.mxu0 0.0
      %577 = vmatprep.subr.mxu0 0.0
      %578 = vmatpush1.msra.mxu0 0.0
      %579 = vmatprep.subr.mxu0 0.0
      %580 = vmatpush1.msra.mxu0 0.0
      %581 = vmatprep.subr.mxu0 0.0
      %582 = vmatpush1.msra.mxu0 0.0
      %583 = vmatprep.subr.mxu0 0.0
      %584 = vmatpush1.msra.mxu0 0.0
      %585 = vmatprep.subr.mxu0 0.0
      %586 = vmatpush1.msra.mxu0 0.0
      %587 = vmatprep.subr.mxu0 0.0
      %588 = vmatpush1.msra.mxu0 %v271
      %589 = vmatprep.subr.mxu0 0.0
      %590 = vmatpush2.msra.mxu0 0.0
      %591 = vmatprep.subr.mxu0 0.0
      %592 = vmatpush2.msra.mxu0 0.0
      %593 = vmatprep.subr.mxu0 0.0
      %594 = vmatpush2.msra.mxu0 0.0
      %595 = vmatprep.subr.mxu0 0.0
      %596 = vmatpush2.msra.mxu0 0.0
      %597 = vmatprep.subr.mxu0 0.0
      %598 = vmatpush2.msra.mxu0 0.0
      %599 = vmatprep.subr.mxu0 0.0
      %600 = vmatpush2.msra.mxu0 0.0
      %601 = vmatprep.subr.mxu0 0.0
      %602 = vmatpush2.msra.mxu0 0.0
      %603 = vmatprep.subr.mxu0 0.0
      %604 = vmatpush2.msra.mxu0 0.0
      %605 = vmatprep.subr.mxu0 0.0
      %606 = vmatpush2.msra.mxu0 0.0
      %607 = vmatprep.subr.mxu0 0.0
      %608 = vmatpush2.msra.mxu0 0.0
      %609 = vmatprep.subr.mxu0 0.0
      %610 = vmatpush2.msra.mxu0 0.0
      %611 = vmatprep.subr.mxu0 0.0
      %612 = vmatpush2.msra.mxu0 0.0
      %613 = vmatprep.subr.mxu0 0.0
      %614 = vmatpush2.msra.mxu0 0.0
      %615 = vmatprep.subr.mxu0 0.0
      %616 = vmatpush2.msra.mxu0 0.0
      %617 = vmatprep.subr.mxu0 0.0
      %618 = vmatpush2.msra.mxu0 0.0
      %619 = vmatprep.subr.mxu0 0.0
      %620 = vmatpush2.msra.mxu0 0.0
      %621 = vmatprep.mubr.f32.mxu0 0.0
      %622 = vmatmul.mubr.f32.gmra.mxu0 %v252
      %v623 = vpop.f32.mrf.mxu0
      %v624 = vadd.f32 0.0, %v623
      %v625 = vpop.f32.mrf.mxu0
      %626 = vdwg.mxu0
      %v627 = vld [vmem:[%s2] sm:$0xff]
      %628 = vrot.lane.b32.xlu0 %v340, 1
      %v629 = vpop.permute.xlu0 %628
      %630 = vrot.lane.b32.xlu0 %v342, 1
      %v631 = vpop.permute.xlu0 %630
      %632 = vrot.lane.b32.xlu0 %v411, 1
      %v633 = vpop.permute.xlu0 %632
      %634 = vrot.lane.b32.xlu0 %v413, 1
      %v635 = vpop.permute.xlu0 %634
      %636 = vrot.lane.b32.xlu0 %v482, 1
      %v637 = vpop.permute.xlu0 %636
      %638 = vrot.lane.b32.xlu0 %v484, 1
      %v639 = vpop.permute.xlu0 %638
      %640 = vrot.lane.b32.xlu0 %v553, 1
      %v641 = vpop.permute.xlu0 %640
      %642 = vrot.lane.b32.xlu0 %v555, 1
      %v643 = vpop.permute.xlu0 %642
      %644 = vrot.lane.b32.xlu0 %v624, 1
      %v645 = vpop.permute.xlu0 %644
      %v646 = vlaneseq
      %v647 = vand.u32 %v646, 127
      %vm648 = vcmp.lt.s32.totalorder %v647, 1
      %v649 = vsel %vm648, %v641, %v643
      %v650 = vsel %vm648, %v639, %v641
      %v651 = vsel %vm648, %v637, %v639
      %v652 = vsel %vm648, %v635, %v637
      %v653 = vsel %vm648, %v633, %v635
      %v654 = vsel %vm648, %v631, %v633
      %v655 = vsel %vm648, %v629, %v631
      %v656 = vsel %vm648, %v645, %v629
      %658 = vset.pattern.permute.xlu0 0
      %659 = vperm.xlu0 %658, %v627
      %v660 = vpop.permute.xlu0 %659
      %v662 = vmul.f32 %v656, %v660
      %v663 = vmul.f32 %v655, %v660
      %v664 = vmul.f32 %v654, %v660
      %v665 = vmul.f32 %v653, %v660
      %v666 = vmul.f32 %v652, %v660
      %v667 = vmul.f32 %v651, %v660
      %v668 = vmul.f32 %v650, %v660
      %v669 = vmul.f32 %v649, %v660
      %670 = vset.pattern.permute.xlu0 1
      %671 = vperm.xlu0 %670, %v627
      %v672 = vpop.permute.xlu0 %671
      %v674 = vmul.f32 %v340, %v672
      %v675 = vmul.f32 %v342, %v672
      %v676 = vmul.f32 %v411, %v672
      %v677 = vmul.f32 %v413, %v672
      %v678 = vmul.f32 %v482, %v672
      %v679 = vmul.f32 %v484, %v672
      %v680 = vmul.f32 %v553, %v672
      %v681 = vmul.f32 %v555, %v672
      %v682 = vadd.f32 %v662, %v674
      %v683 = vadd.f32 %v663, %v675
      %v684 = vadd.f32 %v664, %v676
      %v685 = vadd.f32 %v665, %v677
      %v686 = vadd.f32 %v666, %v678
      %v687 = vadd.f32 %v667, %v679
      %v688 = vadd.f32 %v668, %v680
      %v689 = vadd.f32 %v669, %v681
      %690 = vrot.lane.b32.xlu0 %v340, 127
      %v691 = vpop.permute.xlu0 %690
      %692 = vrot.lane.b32.xlu0 %v342, 127
      %v693 = vpop.permute.xlu0 %692
      %694 = vrot.lane.b32.xlu0 %v411, 127
      %v695 = vpop.permute.xlu0 %694
      %696 = vrot.lane.b32.xlu0 %v413, 127
      %v697 = vpop.permute.xlu0 %696
      %698 = vrot.lane.b32.xlu0 %v482, 127
      %v699 = vpop.permute.xlu0 %698
      %700 = vrot.lane.b32.xlu0 %v484, 127
      %v701 = vpop.permute.xlu0 %700
      %702 = vrot.lane.b32.xlu0 %v553, 127
      %v703 = vpop.permute.xlu0 %702
      %704 = vrot.lane.b32.xlu0 %v555, 127
      %v705 = vpop.permute.xlu0 %704
      %706 = vrot.lane.b32.xlu0 %v624, 127
      %v707 = vpop.permute.xlu0 %706
      %vm708 = vcmp.lt.s32.totalorder %v647, 127
      %v709 = vsel %vm708, %v705, %v707
      %v710 = vsel %vm708, %v703, %v705
      %v711 = vsel %vm708, %v701, %v703
      %v712 = vsel %vm708, %v699, %v701
      %v713 = vsel %vm708, %v697, %v699
      %v714 = vsel %vm708, %v695, %v697
      %v715 = vsel %vm708, %v693, %v695
      %v716 = vsel %vm708, %v691, %v693
      %717 = vset.pattern.permute.xlu0 2
      %718 = vperm.xlu0 %717, %v627
      %v719 = vpop.permute.xlu0 %718
      %v721 = vmul.f32 %v716, %v719
      %v722 = vmul.f32 %v715, %v719
      %v723 = vmul.f32 %v714, %v719
      %v724 = vmul.f32 %v713, %v719
      %v725 = vmul.f32 %v712, %v719
      %v726 = vmul.f32 %v711, %v719
      %v727 = vmul.f32 %v710, %v719
      %v728 = vmul.f32 %v709, %v719
      %v729 = vadd.f32 %v682, %v721
      %v730 = vadd.f32 %v683, %v722
      %v731 = vadd.f32 %v684, %v723
      %v732 = vadd.f32 %v685, %v724
      %v733 = vadd.f32 %v686, %v725
      %v734 = vadd.f32 %v687, %v726
      %v735 = vadd.f32 %v688, %v727
      %v736 = vadd.f32 %v689, %v728
      %737 = vrot.lane.b32.xlu0 %v340, 65
      %v738 = vpop.permute.xlu0 %737
      %739 = vrot.lane.b32.xlu0 %v342, 65
      %v740 = vpop.permute.xlu0 %739
      %741 = vrot.lane.b32.xlu0 %v411, 65
      %v742 = vpop.permute.xlu0 %741
      %743 = vrot.lane.b32.xlu0 %v413, 65
      %v744 = vpop.permute.xlu0 %743
      %745 = vrot.lane.b32.xlu0 %v482, 65
      %v746 = vpop.permute.xlu0 %745
      %747 = vrot.lane.b32.xlu0 %v484, 65
      %v748 = vpop.permute.xlu0 %747
      %749 = vrot.lane.b32.xlu0 %v553, 65
      %v750 = vpop.permute.xlu0 %749
      %751 = vrot.lane.b32.xlu0 %v555, 65
      %v752 = vpop.permute.xlu0 %751
      %753 = vrot.lane.b32.xlu0 %v624, 65
      %v754 = vpop.permute.xlu0 %753
      %vm755 = vcmp.lt.s32.totalorder %v647, 65
      %v756 = vsel %vm755, %v752, %v754
      %v757 = vsel %vm755, %v750, %v752
      %v758 = vsel %vm755, %v748, %v750
      %v759 = vsel %vm755, %v746, %v748
      %v760 = vsel %vm755, %v744, %v746
      %v761 = vsel %vm755, %v742, %v744
      %v762 = vsel %vm755, %v740, %v742
      %v763 = vsel %vm755, %v738, %v740
      %764 = vset.pattern.permute.xlu0 3
      %765 = vperm.xlu0 %764, %v627
      %v766 = vpop.permute.xlu0 %765
      %v768 = vmul.f32 %v763, %v766
      %v769 = vmul.f32 %v762, %v766
      %v770 = vmul.f32 %v761, %v766
      %v771 = vmul.f32 %v760, %v766
      %v772 = vmul.f32 %v759, %v766
      %v773 = vmul.f32 %v758, %v766
      %v774 = vmul.f32 %v757, %v766
      %v775 = vmul.f32 %v756, %v766
      %v776 = vadd.f32 %v729, %v768
      %v777 = vadd.f32 %v730, %v769
      %v778 = vadd.f32 %v731, %v770
      %v779 = vadd.f32 %v732, %v771
      %v780 = vadd.f32 %v733, %v772
      %v781 = vadd.f32 %v734, %v773
      %v782 = vadd.f32 %v735, %v774
      %v783 = vadd.f32 %v736, %v775
      %784 = vrot.lane.b32.xlu0 %v340, 64
      %v785 = vpop.permute.xlu0 %784
      %786 = vrot.lane.b32.xlu0 %v342, 64
      %v787 = vpop.permute.xlu0 %786
      %788 = vrot.lane.b32.xlu0 %v411, 64
      %v789 = vpop.permute.xlu0 %788
      %790 = vrot.lane.b32.xlu0 %v413, 64
      %v791 = vpop.permute.xlu0 %790
      %792 = vrot.lane.b32.xlu0 %v482, 64
      %v793 = vpop.permute.xlu0 %792
      %794 = vrot.lane.b32.xlu0 %v484, 64
      %v795 = vpop.permute.xlu0 %794
      %796 = vrot.lane.b32.xlu0 %v553, 64
      %v797 = vpop.permute.xlu0 %796
      %798 = vrot.lane.b32.xlu0 %v555, 64
      %v799 = vpop.permute.xlu0 %798
      %800 = vrot.lane.b32.xlu0 %v624, 64
      %v801 = vpop.permute.xlu0 %800
      %vm802 = vcmp.lt.s32.totalorder %v647, 64
      %v803 = vsel %vm802, %v799, %v801
      %v804 = vsel %vm802, %v797, %v799
      %v805 = vsel %vm802, %v795, %v797
      %v806 = vsel %vm802, %v793, %v795
      %v807 = vsel %vm802, %v791, %v793
      %v808 = vsel %vm802, %v789, %v791
      %v809 = vsel %vm802, %v787, %v789
      %v810 = vsel %vm802, %v785, %v787
      %811 = vset.pattern.permute.xlu0 4
      %812 = vperm.xlu0 %811, %v627
      %v813 = vpop.permute.xlu0 %812
      %v815 = vmul.f32 %v810, %v813
      %v816 = vmul.f32 %v809, %v813
      %v817 = vmul.f32 %v808, %v813
      %v818 = vmul.f32 %v807, %v813
      %v819 = vmul.f32 %v806, %v813
      %v820 = vmul.f32 %v805, %v813
      %v821 = vmul.f32 %v804, %v813
      %v822 = vmul.f32 %v803, %v813
      %v823 = vadd.f32 %v776, %v815
      %v824 = vadd.f32 %v777, %v816
      %v825 = vadd.f32 %v778, %v817
      %v826 = vadd.f32 %v779, %v818
      %v827 = vadd.f32 %v780, %v819
      %v828 = vadd.f32 %v781, %v820
      %v829 = vadd.f32 %v782, %v821
      %v830 = vadd.f32 %v783, %v822
      %831 = vrot.lane.b32.xlu0 %v340, 63
      %v832 = vpop.permute.xlu0 %831
      %833 = vrot.lane.b32.xlu0 %v342, 63
      %v834 = vpop.permute.xlu0 %833
      %835 = vrot.lane.b32.xlu0 %v411, 63
      %v836 = vpop.permute.xlu0 %835
      %837 = vrot.lane.b32.xlu0 %v413, 63
      %v838 = vpop.permute.xlu0 %837
      %839 = vrot.lane.b32.xlu0 %v482, 63
      %v840 = vpop.permute.xlu0 %839
      %841 = vrot.lane.b32.xlu0 %v484, 63
      %v842 = vpop.permute.xlu0 %841
      %843 = vrot.lane.b32.xlu0 %v553, 63
      %v844 = vpop.permute.xlu0 %843
      %845 = vrot.lane.b32.xlu0 %v555, 63
      %v846 = vpop.permute.xlu0 %845
      %847 = vrot.lane.b32.xlu0 %v624, 63
      %v848 = vpop.permute.xlu0 %847
      %vm849 = vcmp.lt.s32.totalorder %v647, 63
      %v850 = vsel %vm849, %v846, %v848
      %v851 = vsel %vm849, %v844, %v846
      %v852 = vsel %vm849, %v842, %v844
      %v853 = vsel %vm849, %v840, %v842
      %v854 = vsel %vm849, %v838, %v840
      %v855 = vsel %vm849, %v836, %v838
      %v856 = vsel %vm849, %v834, %v836
      %v857 = vsel %vm849, %v832, %v834
      %858 = vset.pattern.permute.xlu0 5
      %859 = vperm.xlu0 %858, %v627
      %v860 = vpop.permute.xlu0 %859
      %v862 = vmul.f32 %v857, %v860
      %v863 = vmul.f32 %v856, %v860
      %v864 = vmul.f32 %v855, %v860
      %v865 = vmul.f32 %v854, %v860
      %v866 = vmul.f32 %v853, %v860
      %v867 = vmul.f32 %v852, %v860
      %v868 = vmul.f32 %v851, %v860
      %v869 = vmul.f32 %v850, %v860
      %v870 = vadd.f32 %v823, %v862
      %v871 = vadd.f32 %v824, %v863
      %v872 = vadd.f32 %v825, %v864
      %v873 = vadd.f32 %v826, %v865
      %v874 = vadd.f32 %v827, %v866
      %v875 = vadd.f32 %v828, %v867
      %v876 = vadd.f32 %v829, %v868
      %v877 = vadd.f32 %v830, %v869
      %v878 = vsel %vm648, %v643, %v645
      %879 = vset.pattern.permute.xlu0 6
      %880 = vperm.xlu0 %879, %v627
      %v881 = vpop.permute.xlu0 %880
      %v883 = vmul.f32 %v655, %v881
      %v884 = vmul.f32 %v654, %v881
      %v885 = vmul.f32 %v653, %v881
      %v886 = vmul.f32 %v652, %v881
      %v887 = vmul.f32 %v651, %v881
      %v888 = vmul.f32 %v650, %v881
      %v889 = vmul.f32 %v649, %v881
      %v890 = vmul.f32 %v878, %v881
      %v891 = vadd.f32 %v870, %v883
      %v892 = vadd.f32 %v871, %v884
      %v893 = vadd.f32 %v872, %v885
      %v894 = vadd.f32 %v873, %v886
      %v895 = vadd.f32 %v874, %v887
      %v896 = vadd.f32 %v875, %v888
      %v897 = vadd.f32 %v876, %v889
      %v898 = vadd.f32 %v877, %v890
      %899 = vset.pattern.permute.xlu0 7
      %900 = vperm.xlu0 %899, %v627
      %v901 = vpop.permute.xlu0 %900
      %v903 = vmul.f32 %v342, %v901
      %v904 = vmul.f32 %v411, %v901
      %v905 = vmul.f32 %v413, %v901
      %v906 = vmul.f32 %v482, %v901
      %v907 = vmul.f32 %v484, %v901
      %v908 = vmul.f32 %v553, %v901
      %v909 = vmul.f32 %v555, %v901
      %v910 = vmul.f32 %v624, %v901
      %v911 = vadd.f32 %v891, %v903
      %v912 = vadd.f32 %v892, %v904
      %v913 = vadd.f32 %v893, %v905
      %v914 = vadd.f32 %v894, %v906
      %v915 = vadd.f32 %v895, %v907
      %v916 = vadd.f32 %v896, %v908
      %v917 = vadd.f32 %v897, %v909
      %v918 = vadd.f32 %v898, %v910
      %v919 = vsel %vm708, %v707, %v691
      %920 = vset.pattern.permute.xlu0 8
      %921 = vperm.xlu0 %920, %v627
      %v922 = vpop.permute.xlu0 %921
      %v924 = vmul.f32 %v715, %v922
      %v925 = vmul.f32 %v714, %v922
      %v926 = vmul.f32 %v713, %v922
      %v927 = vmul.f32 %v712, %v922
      %v928 = vmul.f32 %v711, %v922
      %v929 = vmul.f32 %v710, %v922
      %v930 = vmul.f32 %v709, %v922
      %v931 = vmul.f32 %v919, %v922
      %v932 = vadd.f32 %v911, %v924
      %v933 = vadd.f32 %v912, %v925
      %v934 = vadd.f32 %v913, %v926
      %v935 = vadd.f32 %v914, %v927
      %v936 = vadd.f32 %v915, %v928
      %v937 = vadd.f32 %v916, %v929
      %v938 = vadd.f32 %v917, %v930
      %v939 = vadd.f32 %v918, %v931
      %v940 = vld [vmem:[%s3] sm:$0xff]
      %942 = vset.pattern.permute.xlu0 0
      %943 = vperm.xlu0 %942, %v940
      %v944 = vpop.permute.xlu0 %943
      %v946 = vadd.f32 %v932, %v944
      %v947 = vadd.f32 %v933, %v944
      %v948 = vadd.f32 %v934, %v944
      %v949 = vadd.f32 %v935, %v944
      %v950 = vadd.f32 %v936, %v944
      %v951 = vadd.f32 %v937, %v944
      %v952 = vadd.f32 %v938, %v944
      %v953 = vadd.f32 %v939, %v944
      %954 = vst [vmem:[%s233] sm:$0xff] %v946
      %955 = vst [vmem:[%s233 + $0x8] sm:$0xff] %v947
      %956 = vst [vmem:[%s233 + $0x10] sm:$0xff] %v948
      %957 = vst [vmem:[%s233 + $0x18] sm:$0xff] %v949
      %958 = vst [vmem:[%s233 + $0x20] sm:$0xff] %v950
      %959 = vst [vmem:[%s233 + $0x28] sm:$0xff] %v951
      %960 = vst [vmem:[%s233 + $0x30] sm:$0xff] %v952
      %961 = vst [vmem:[%s233 + $0x38] sm:$0xff] %v953
      %s962 = smul.u32 8, %s20
      %p963 = scmp.lt.s32.totalorder %s19, 1
      %s964 = scalar_select %p963, %s19, 1
      %p965 = scmp.lt.s32.totalorder %s962, 7
      %s966 = scalar_select %p965, %s962, 7
      %s967 = smul.addr %s964, 8
      %s968 = sadd.s32 %s966, %s967
      %s969 = smul.addr %s968, 8
      %s970 = scalar_lea.vmem %s4, %s969
      // Predicated region
      $region37: #{bsconvu_forward.1} parent=35 // pred_check
        %p971 = pneg %p138
      $region38: #{bsconvu_forward.1} parent=35 // pred_check_branch
        %973 = sbr.rel (%p971) target = $region40
      $region39: #{bsconvu_forward.1} parent=35 // pred_region
        %s974 = smul.u32 8, %s20
      $region40: #{bsconvu_forward.1} parent=35 // pred_fallthru
        _
    $region36: #{bsconvu_forward.1} parent=5 // pred_fallthru
      _
    %p975 = scmp.le.s32.totalorder 2, %s10
    // Predicated region
    $region41: #{bsconvu_forward.1} parent=5 // pred_check
      %p976 = pneg %p975
    $region42: #{bsconvu_forward.1} parent=5 // pred_check_branch
      %978 = sbr.rel (%p976) target = $region44
    $region43: #{bsconvu_forward.1} parent=5 // pred_region
      %s979 = ssub.s32 %s10, 2
      // Predicated region
      $region45: #{bsconvu_forward.1} parent=43 // pred_check
        %p980 = pneg %p144
      $region46: #{bsconvu_forward.1} parent=43 // pred_check_branch
        %982 = sbr.rel (%p980) target = $region48
      $region47: #{bsconvu_forward.1} parent=43 // pred_region
        %s983 = smul.u32 8, %s22
        %p984 = scmp.lt.s32.totalorder %s21, 1
        %s985 = scalar_select %p984, %s21, 1
        %p986 = scmp.lt.s32.totalorder %s983, 7
        %s987 = scalar_select %p986, %s983, 7
        %s988 = smul.addr %s985, 8
        %s989 = sadd.s32 %s987, %s988
        %s990 = smul.addr %s989, 8
        %s991 = scalar_lea.vmem %s4, %s990
      $region48: #{bsconvu_forward.1} parent=43 // pred_fallthru
        _
    $region44: #{bsconvu_forward.1} parent=5 // pred_fallthru
      _
  $region6: #{bsconvu_forward.1} parent=0 // loop_footer
    %s14 = sadd.s32 1, %s10
  $region7: #{bsconvu_forward.1} parent=0 // loop_footer_branch
    %9 = sbr.rel target = $region3
  $region8: #{bsconvu_forward.1} parent=0 // loop_exit
    _

</llo_original>
